<compile_context>
chip_gen: v5e
topology: v5e:2x2
jax: 0.10.0
libtpu: 0.0.40
codegen_flags: <defaults>
</compile_context>

<pallas_src>
import functools
import math

import jax
import jax.numpy as jnp
from jax import lax
from jax.experimental import pallas as pl
from jax.experimental.pallas import tpu as pltpu


def _round_up(x, n):
    return ((x + n - 1) // n) * n


# ---------------------------------------------------------------------------
# Pass 1: z = normalize(f, dim=1) @ W   and   S = sum_j exp(z_j)   (per row)
# ---------------------------------------------------------------------------
def _zpass_kernel(f_ref, w_ref, z_ref, ssum_ref, fn_ref, *,
                  eps, num_classes, block_c, needs_mask):
    c = pl.program_id(1)

    # Once per batch tile (first class tile): cache the row-normalized f tile
    # in VMEM and zero the row-sum accumulator.  The ssum output block is
    # resident across the class axis, so it doubles as the accumulator.
    @pl.when(c == 0)
    def _():
        f = f_ref[...]
        sumsq = jnp.sum(f * f, axis=1, keepdims=True)
        inv_norm = lax.rsqrt(jnp.maximum(sumsq, eps * eps))   # == 1/max(||f||, eps)
        fn_ref[...] = f * inv_norm
        ssum_ref[...] = jnp.zeros_like(ssum_ref)

    # z = fn @ W (un-normalized W, as in the reference); note s*cosa == z.
    z = jnp.dot(fn_ref[...], w_ref[...], preferred_element_type=jnp.float32)
    z_ref[...] = z                      # reused by the finalize pass (no recompute)
    e = jnp.exp(z)                      # exp(s*cos(a))
    # TODO(synk): exp(z) matches the reference but overflows f32 when
    # sqrt(B*C) is huge; a flash-style exp(z - rowmax) rescale would fix it.

    if needs_mask:
        last = pl.num_programs(1) - 1

        @pl.when(c == last)
        def _():
            # Only the last class tile contains zero-padded columns.
            col = c * block_c + lax.broadcasted_iota(jnp.int32, e.shape, 1)
            ssum_ref[...] += jnp.sum(
                jnp.where(col < num_classes, e, 0.0), axis=1, keepdims=True)

        @pl.when(c != last)
        def _():
            ssum_ref[...] += jnp.sum(e, axis=1, keepdims=True)
    else:
        ssum_ref[...] += jnp.sum(e, axis=1, keepdims=True)


# ---------------------------------------------------------------------------
# Pass 2: element-wise finalize
#   out = e_marg / (S - e_orig + e_marg)
#   with  e_orig = exp(z),  e_marg = exp(z*cos(m) - sin(m)*sqrt(s^2 - z^2))
# ---------------------------------------------------------------------------
def _finalize_kernel(z_ref, ssum_ref, out_ref, *, cos_m, sin_m, s_sq, approx_recip):
    z = z_ref[...]
    e_orig = jnp.exp(z)
    # s*cos(acos(z/s) + m) == z*cos(m) - sin(m)*sqrt(s^2 - z^2)
    # (NaN when |z| > s, matching the reference's out-of-domain acos).
    e_marg = jnp.exp(z * cos_m - sin_m * jnp.sqrt(s_sq - z * z))
    denom = ssum_ref[...] - e_orig + e_marg
    if approx_recip:
        out_ref[...] = e_marg * pl.reciprocal(denom, approx=True)
    else:
        out_ref[...] = e_marg / denom


class ArcLossTPU:
    """ArcFace-style arc-softmax forward on TPU (two Pallas passes)."""

    def __init__(self, w, m, *, eps=1e-12, block_b=256, block_c=512,
                 approx_recip=False, vmem_budget=32 * 1024 * 1024):
        self.D, self.C = w.shape
        self.m = float(m)
        self.eps = float(eps)
        self.block_b = int(block_b)
        self.approx_recip = bool(approx_recip)

        # Lane-dense class tiling; keep the pass-1 double-buffered working set
        # under the VMEM budget (assuming the largest batch tile we ever pick).
        tc = min(int(block_c), _round_up(self.C, 128))

        def est(tb, tc_):
            # 2x (f tile + W tile + z tile + ssum tile) double-buffer + fn cache
            return (2 * (tb * self.D + self.D * tc_ + tb * tc_ + tb)
                    + tb * self.D) * 4

        while tc > 128 and est(self.block_b, tc) > vmem_budget:
            tc = max(128, (tc // 2) // 128 * 128)
        self.tc = tc
        self.c_pad = _round_up(self.C, tc)
        # Pad W ONCE here (not per forward call).
        self.w_p = (jnp.pad(w, ((0, 0), (0, self.c_pad - self.C)))
                    if self.c_pad != self.C else w)
        self._vmem_est = est
        # TODO(synk): for very large D (>= 4096) a K-tiled (D) accumulator path
        # would shrink the (D, tc) W double-buffer further on v7x's 64 MiB VMEM.

    def __call__(self, f):
        B, D = f.shape
        assert D == self.D
        C, c_pad, tc = self.C, self.c_pad, self.tc

        # Batch tile: as large as possible (fewer W streams), but split in two
        # when the whole batch would fit in one tile so v7x's 2nd TC gets work.
        tb = min(self.block_b, _round_up(B, 8))
        if B >= 256 and _round_up(B, tb) // tb == 1:
            tb = max(8, _round_up((B + 1) // 2, 8))
        b_pad = _round_up(B, tb)
        n_b = b_pad // tb
        n_c = c_pad // tc
        needs_mask = (c_pad != C)
        # TODO(synk): if n_b >> 1, a class-outer grid (W resident, f/z streamed)
        # would cut W HBM reads to a single pass at the cost of re-streaming f.

        f_p = jnp.pad(f, ((0, b_pad - B), (0, 0))) if b_pad != B else f

        def _limit(nbytes):
            return min(int(nbytes * 1.5) + (4 << 20), 64 << 20)

        # ---- Pass 1: z and row sums ------------------------------------
        zpass = functools.partial(
            _zpass_kernel, eps=self.eps, num_classes=C,
            block_c=tc, needs_mask=needs_mask)

        z, ssum = pl.pallas_call(
            zpass,
            out_shape=(jax.ShapeDtypeStruct((b_pad, c_pad), jnp.float32),
                       jax.ShapeDtypeStruct((b_pad, 1), jnp.float32)),
            grid_spec=pltpu.PrefetchScalarGridSpec(
                num_scalar_prefetch=0,
                grid=(n_b, n_c),
                in_specs=[
                    pl.BlockSpec((tb, D), lambda b, c: (b, 0)),    # f tile (resident per b)
                    pl.BlockSpec((D, tc), lambda b, c: (0, c)),    # streamed W tiles
                ],
                out_specs=(
                    pl.BlockSpec((tb, tc), lambda b, c: (b, c)),   # z (useful writeback)
                    pl.BlockSpec((tb, 1), lambda b, c: (b, 0)),    # row sums (accumulator)
                ),
                scratch_shapes=[pltpu.VMEM((tb, D), jnp.float32)],  # normalized f cache
            ),
            compiler_params=pltpu.CompilerParams(
                dimension_semantics=("parallel", "arbitrary"),
                vmem_limit_bytes=_limit(self._vmem_est(tb, tc)),
            ),
        )(f_p, self.w_p)

        # s = ||normalize(f,1)||_F * ||normalize(W,0)||_F == sqrt(B*C) analytically,
        # so the whole W-normalization pass disappears.
        # TODO(synk): deviates from the reference only if a row of f or a column
        # of W has L2 norm below eps (all-zero vector).
        s_sq = float(B) * float(C)

        # ---- Pass 2: element-wise finalize ------------------------------
        fin = functools.partial(
            _finalize_kernel, cos_m=math.cos(self.m), sin_m=math.sin(self.m),
            s_sq=s_sq, approx_recip=self.approx_recip)

        out = pl.pallas_call(
            fin,
            out_shape=jax.ShapeDtypeStruct((b_pad, c_pad), jnp.float32),
            grid_spec=pltpu.PrefetchScalarGridSpec(
                num_scalar_prefetch=0,
                grid=(n_b, n_c),
                in_specs=[
                    pl.BlockSpec((tb, tc), lambda b, c: (b, c)),   # cached z
                    pl.BlockSpec((tb, 1), lambda b, c: (b, 0)),    # row sums
                ],
                out_specs=pl.BlockSpec((tb, tc), lambda b, c: (b, c)),
            ),
            compiler_params=pltpu.CompilerParams(
                dimension_semantics=("parallel", "parallel"),
                vmem_limit_bytes=_limit((2 * (2 * tb * tc + tb)) * 4),
            ),
        )(z, ssum)

        if b_pad == B and c_pad == C:
            return out            # no padding -> no slice copy
        return out[:B, :C]


def arcloss_ref(f, w, m, *, eps=1e-12):
    """Pure-JAX reference mirroring the PyTorch forward."""
    fn = f / jnp.maximum(jnp.linalg.norm(f, axis=1, keepdims=True), eps)
    wn = w / jnp.maximum(jnp.linalg.norm(w, axis=0, keepdims=True), eps)
    s = jnp.sqrt(jnp.sum(fn * fn)) * jnp.sqrt(jnp.sum(wn * wn))
    cosa = jnp.matmul(fn, w) / s
    angle = jnp.arccos(cosa)
    e_orig = jnp.exp(s * cosa)
    e_marg = jnp.exp(s * jnp.cos(angle + m))
    return e_marg / (jnp.sum(e_orig, axis=1, keepdims=True) - e_orig + e_marg)


if __name__ == "__main__":
    # Module: Arcloss(input_dim=32, output_dim=16, m=0.5); batch of 8 features.
    B, D, C = 8, 32, 16
    m = 0.5

    key = jax.random.PRNGKey(0)
    kf, kw = jax.random.split(key)
    f = jax.random.normal(kf, (B, D), dtype=jnp.float32)
    # Deterministic parameter init (torch.randn(input_dim, output_dim) analogue).
    w = jax.random.normal(kw, (D, C), dtype=jnp.float32)

    arcloss = ArcLossTPU(w, m)          # W padded / laid out once here
    out = jax.block_until_ready(arcloss(f))
    ref = arcloss_ref(f, w, m)

    assert out.shape == (B, C)
    max_err = float(jnp.max(jnp.abs(out - ref)))
    assert jnp.allclose(out, ref, atol=1e-5, rtol=1e-5), f"max abs err {max_err}"
    print("KERNEL_OK")
</pallas_src>

<mosaic_0001>
module attributes {stable_mosaic.version = 11 : i64} {
  func.func @_zpass_kernel(%arg0: i32, %arg1: i32, %arg2: memref<8x32xf32, #tpu.memory_space<vmem>>, %arg3: memref<32x128xf32, #tpu.memory_space<vmem>>, %arg4: memref<8x128xf32, #tpu.memory_space<vmem>>, %arg5: memref<8x1xf32, #tpu.memory_space<vmem>>, %arg6: memref<8x32xf32, #tpu.memory_space<vmem>>) attributes {dimension_semantics = [#tpu.dimension_semantics<parallel>, #tpu.dimension_semantics<arbitrary>], iteration_bounds = array<i64: 1, 1>, scalar_prefetch = 0 : i64, scratch_operands = 1 : i64, tpu.core_type = #tpu.core_type<tc>, window_params = [{transform_indices = @transform_0, window_bounds = array<i64: 8, 32>}, {transform_indices = @transform_1, window_bounds = array<i64: 32, 128>}, {transform_indices = @transform_2, window_bounds = array<i64: 8, 128>}, {transform_indices = @transform_3, window_bounds = array<i64: 8, 1>}]} {
    %c0_i32 = arith.constant 0 : i32
    %0 = arith.cmpi eq, %arg1, %c0_i32 : i32
    %1 = arith.extui %0 : i1 to i32
    %c0_i32_0 = arith.constant 0 : i32
    %2 = arith.cmpi ne, %1, %c0_i32_0 : i32
    scf.if %2 {
      %c0_10 = arith.constant 0 : index
      %c0_11 = arith.constant 0 : index
      %14 = vector.load %arg2[%c0_10, %c0_11] : memref<8x32xf32, #tpu.memory_space<vmem>>, vector<8x32xf32>
      %15 = arith.mulf %14, %14 : vector<8x32xf32>
      %cst_12 = arith.constant dense<0.000000e+00> : vector<8xf32>
      %16 = vector.multi_reduction <add>, %15, %cst_12 [1] : vector<8x32xf32> to vector<8xf32>
      %17 = vector.shape_cast %16 : vector<8xf32> to vector<8x1xf32>
      %cst_13 = arith.constant 1.000000e-24 : f32
      %18 = vector.broadcast %cst_13 : f32 to vector<8x1xf32>
      %19 = arith.maximumf %17, %18 : vector<8x1xf32>
      %20 = math.rsqrt %19 : vector<8x1xf32>
      %21 = vector.broadcast %20 : vector<8x1xf32> to vector<8x32xf32>
      %22 = arith.mulf %14, %21 : vector<8x32xf32>
      %c0_14 = arith.constant 0 : index
      %c0_15 = arith.constant 0 : index
      %23 = vector.load %arg6[%c0_14, %c0_15] : memref<8x32xf32, #tpu.memory_space<vmem>>, vector<8x32xf32>
      tpu.vector_store %arg6[%c0_14, %c0_15], %22 {strides = array<i32>} : memref<8x32xf32, #tpu.memory_space<vmem>>, vector<8x32xf32>,
      %cst_16 = arith.constant 0.000000e+00 : f32
      %24 = vector.broadcast %cst_16 : f32 to vector<8x1xf32>
      %c0_17 = arith.constant 0 : index
      %c0_18 = arith.constant 0 : index
      %25 = vector.load %arg5[%c0_17, %c0_18] : memref<8x1xf32, #tpu.memory_space<vmem>>, vector<8x1xf32>
      tpu.vector_store %arg5[%c0_17, %c0_18], %24 {strides = array<i32>} : memref<8x1xf32, #tpu.memory_space<vmem>>, vector<8x1xf32>,
    } else {
    }
    %c0 = arith.constant 0 : index
    %c0_1 = arith.constant 0 : index
    %3 = vector.load %arg6[%c0, %c0_1] : memref<8x32xf32, #tpu.memory_space<vmem>>, vector<8x32xf32>
    %c0_2 = arith.constant 0 : index
    %c0_3 = arith.constant 0 : index
    %4 = vector.load %arg3[%c0_2, %c0_3] : memref<32x128xf32, #tpu.memory_space<vmem>>, vector<32x128xf32>
    %cst = arith.constant dense<0.000000e+00> : vector<8x128xf32>
    %5 = tpu.matmul %3, %4, %cst {dimension_numbers = #tpu.dot_dimension_numbers<[1], [0], [0], [1], [0, 0, 1, 1], [], []>} : vector<8x32xf32>, vector<32x128xf32>, vector<8x128xf32> -> vector<8x128xf32>
    %c0_4 = arith.constant 0 : index
    %c0_5 = arith.constant 0 : index
    %6 = vector.load %arg4[%c0_4, %c0_5] : memref<8x128xf32, #tpu.memory_space<vmem>>, vector<8x128xf32>
    tpu.vector_store %arg4[%c0_4, %c0_5], %5 {strides = array<i32>} : memref<8x128xf32, #tpu.memory_space<vmem>>, vector<8x128xf32>,
    %7 = math.exp %5 : vector<8x128xf32>
    %c0_i32_6 = arith.constant 0 : i32
    %8 = arith.cmpi eq, %arg1, %c0_i32_6 : i32
    %9 = arith.extui %8 : i1 to i32
    %c0_i32_7 = arith.constant 0 : i32
    %10 = arith.cmpi ne, %9, %c0_i32_7 : i32
    scf.if %10 {
      %c128_i32 = arith.constant 128 : i32
      %14 = arith.muli %arg1, %c128_i32 : i32
      %15 = tpu.iota {dimensions = array<i32: 1>} : vector<8x128xi32>
      %16 = vector.broadcast %14 : i32 to vector<8x128xi32>
      %17 = arith.addi %16, %15 : vector<8x128xi32>
      %c0_10 = arith.constant 0 : index
      %c0_11 = arith.constant 0 : index
      %18 = vector.load %arg5[%c0_10, %c0_11] : memref<8x1xf32, #tpu.memory_space<vmem>>, vector<8x1xf32>
      %c16_i32 = arith.constant 16 : i32
      %19 = vector.broadcast %c16_i32 : i32 to vector<8x128xi32>
      %20 = arith.cmpi slt, %17, %19 : vector<8x128xi32>
      %cst_12 = arith.constant 0.000000e+00 : f32
      %21 = vector.broadcast %cst_12 : f32 to vector<8x128xf32>
      %22 = arith.select %20, %7, %21 : vector<8x128xi1>, vector<8x128xf32>
      %cst_13 = arith.constant dense<0.000000e+00> : vector<8xf32>
      %23 = vector.multi_reduction <add>, %22, %cst_13 [1] : vector<8x128xf32> to vector<8xf32>
      %24 = vector.shape_cast %23 : vector<8xf32> to vector<8x1xf32>
      %25 = arith.addf %18, %24 : vector<8x1xf32>
      %c0_14 = arith.constant 0 : index
      %c0_15 = arith.constant 0 : index
      %26 = vector.load %arg5[%c0_14, %c0_15] : memref<8x1xf32, #tpu.memory_space<vmem>>, vector<8x1xf32>
      tpu.vector_store %arg5[%c0_14, %c0_15], %25 {strides = array<i32>} : memref<8x1xf32, #tpu.memory_space<vmem>>, vector<8x1xf32>,
    } else {
    }
    %c0_i32_8 = arith.constant 0 : i32
    %11 = arith.cmpi ne, %arg1, %c0_i32_8 : i32
    %12 = arith.extui %11 : i1 to i32
    %c0_i32_9 = arith.constant 0 : i32
    %13 = arith.cmpi ne, %12, %c0_i32_9 : i32
    scf.if %13 {
      %c0_10 = arith.constant 0 : index
      %c0_11 = arith.constant 0 : index
      %14 = vector.load %arg5[%c0_10, %c0_11] : memref<8x1xf32, #tpu.memory_space<vmem>>, vector<8x1xf32>
      %cst_12 = arith.constant dense<0.000000e+00> : vector<8xf32>
      %15 = vector.multi_reduction <add>, %7, %cst_12 [1] : vector<8x128xf32> to vector<8xf32>
      %16 = vector.shape_cast %15 : vector<8xf32> to vector<8x1xf32>
      %17 = arith.addf %14, %16 : vector<8x1xf32>
      %c0_13 = arith.constant 0 : index
      %c0_14 = arith.constant 0 : index
      %18 = vector.load %arg5[%c0_13, %c0_14] : memref<8x1xf32, #tpu.memory_space<vmem>>, vector<8x1xf32>
      tpu.vector_store %arg5[%c0_13, %c0_14], %17 {strides = array<i32>} : memref<8x1xf32, #tpu.memory_space<vmem>>, vector<8x1xf32>,
    } else {
    }
    return
  }
  func.func @transform_0(%arg0: i32, %arg1: i32) -> (i32, i32) {
    %c0_i32 = arith.constant 0 : i32
    %c0_i32_0 = arith.constant 0 : i32
    return %arg0, %c0_i32 : i32, i32
  }
  func.func @transform_1(%arg0: i32, %arg1: i32) -> (i32, i32) {
    %c0_i32 = arith.constant 0 : i32
    %c0_i32_0 = arith.constant 0 : i32
    return %c0_i32, %arg1 : i32, i32
  }
  func.func @transform_2(%arg0: i32, %arg1: i32) -> (i32, i32) {
    %c0_i32 = arith.constant 0 : i32
    return %arg0, %arg1 : i32, i32
  }
  func.func @transform_3(%arg0: i32, %arg1: i32) -> (i32, i32) {
    %c0_i32 = arith.constant 0 : i32
    %c0_i32_0 = arith.constant 0 : i32
    return %arg0, %c0_i32 : i32, i32
  }
}

</mosaic_0001>

<llo_original>
// kernel: tpu_custom_call.1
$region0: #{tpu_custom_call.1}
  #allocation0 [shape = 'u32[]', space=smem, size = 0x4, offset = 0x4, fixed_abs, tag = 'smem constant byte address 0x4 - core index']
  #allocation1 [shape = 'u32[72,128]{1,0:T(1,128)}', space=vmem, size = 0x9000, scoped, tag = 'internal scratch']
  #allocation2 [shape = 'f32[8,32]{1,0:T(8,128)}', space=vmem, size = 0x1000, scoped, tag = 'scratch operand']
  %s0 = inlined_call_operand.hbm [shape: f32[8,32], index: 0, kind: input, shape index: {}]
  %s1 = inlined_call_operand.hbm [shape: f32[32,128], index: 1, kind: input, shape index: {}]
  %s2 = inlined_call_operand.hbm [shape: f32[8,128], index: 2, kind: output, shape index: {0}]
  %s3 = inlined_call_operand.vmem [shape: f32[8,1], index: 3, kind: output, shape index: {1}]
  %4 = xla_tuple %s2, %s3
  %s5 = sld [smem:[#allocation0]]
  $region46: #{tpu_custom_call.1} parent=0
    _
  %s7 = ssub.s32 1, %s5
  %s8 = scalar_select 0, %s7, %s5
  $region1: #{tpu_custom_call.1} parent=0
    #allocation3 [shape = 'u8[4096]{0}', space=vmem, size = 0x1000, scoped, tag = 'input window, operand 0, single buffered']
    #allocation4 [shape = 's32[1]{0}', space=sflag, size = 0x4, scoped, tag = 'scoped memory for tpu_custom_call.1']
    #allocation5 [shape = 's32[1]{0}', space=sflag, size = 0x4, scoped, tag = 'scoped memory for tpu_custom_call.1']
    #allocation6 [shape = 'u8[16384]{0}', space=vmem, size = 0x4000, scoped, tag = 'input window, operand 1, single buffered']
    #allocation7 [shape = 's32[1]{0}', space=sflag, size = 0x4, scoped, tag = 'scoped memory for tpu_custom_call.1']
    #allocation8 [shape = 'u8[4096]{0}', space=vmem, size = 0x1000, scoped, tag = 'output window, operand 0, single buffered']
    %9 = vsyncpa [#allocation4], 0
    %10 = vsyncpa [#allocation7], 0
    %11 = vsyncpa [#allocation5], 0
    // Predicated region
    $region2: #{tpu_custom_call.1} parent=1 // pred_check
      _
    $region3: #{tpu_custom_call.1} parent=1 // pred_check_branch
      %13 = sbr.rel (0) target = $region5
    $region4: #{tpu_custom_call.1} parent=1 // pred_region
      %15 = vsyncadd [#allocation4], 0
      %s17 = sshll.u32 %s0, 4
      %s18 = int_to_ptr.hbm [resolvable:$true] %s17
      %s19 = sshll.u32 [#allocation3], 4
      %s20 = int_to_ptr.vmem [resolvable:$true] %s19
      %22 = dma.hbm_to_vmem [thread:$0]  %s18, 128, %s20, [#allocation4]
    $region5: #{tpu_custom_call.1} parent=1 // pred_fallthru
      _
    // Predicated region
    $region6: #{tpu_custom_call.1} parent=1 // pred_check
      _
    $region7: #{tpu_custom_call.1} parent=1 // pred_check_branch
      %24 = sbr.rel (0) target = $region9
    $region8: #{tpu_custom_call.1} parent=1 // pred_region
      %26 = vsyncadd [#allocation7], 0
      %s27 = sshll.u32 %s1, 4
      %s28 = int_to_ptr.hbm [resolvable:$true] %s27
      %s29 = sshll.u32 [#allocation6], 4
      %s30 = int_to_ptr.vmem [resolvable:$true] %s29
      %35 = dma.hbm_to_vmem [thread:$0]  %s28, 512, %s30, [#allocation7], 128, 128, 8
    $region9: #{tpu_custom_call.1} parent=1 // pred_fallthru
      _
    // Predicated region
    $region10: #{tpu_custom_call.1} parent=1 // pred_check
      _
    $region11: #{tpu_custom_call.1} parent=1 // pred_check_branch
      %37 = sbr.rel (0) target = $region13
    $region12: #{tpu_custom_call.1} parent=1 // pred_region
      %39 = dma.done [#allocation4], 128
    $region13: #{tpu_custom_call.1} parent=1 // pred_fallthru
      _
    // Predicated region
    $region14: #{tpu_custom_call.1} parent=1 // pred_check
      _
    $region15: #{tpu_custom_call.1} parent=1 // pred_check_branch
      %41 = sbr.rel (0) target = $region17
    $region16: #{tpu_custom_call.1} parent=1 // pred_region
      %43 = dma.done [#allocation7], 512
    $region17: #{tpu_custom_call.1} parent=1 // pred_fallthru
      _
    %p44 = scmp.eq.s32.totalorder 0, 0
    // Predicated region
    $region18: #{tpu_custom_call.1} parent=1 // pred_check
      %p45 = pneg %p44
    $region19: #{tpu_custom_call.1} parent=1 // pred_check_branch
      %47 = sbr.rel (%p45) target = $region21
    $region20: #{tpu_custom_call.1} parent=1 // pred_region
      %v48 = vld [vmem:[#allocation3] sm:$0xff]
      %v49 = vmul.f32 %v48, %v48
      %vm50 = vcmask 261120
      %v51 = vsel %vm50, %v49, 0.0
      %52 = vadd.xlane.f32.xlu0 %v51
      %v53 = vpop.xlane.xlu0 %52
      %v54 = vmax.f32 %v53, 1e-24
      %v55 = vrsqrt.pop %v54
      %v56 = vmul.f32 %v55, %v54
      %v57 = vmul.f32 %v56, %v55
      %v58 = vmul.f32 0.5, %v57
      %v59 = vsub.f32 1.5, %v58
      %v60 = vmul.f32 %v55, %v59
      %vm61 = vweird.f32 %v54
      %vm62 = vweird.f32 %v55
      %vm63 = vmor %vm61, %vm62
      %v64 = vsel %vm63, %v55, %v60
      %v65 = vmul.f32 %v48, %v64
      %66 = vst.msk [vmem:[#allocation2] sm:$0xff] %vm50, %v65
      %vm67 = vcmask 7168
      %68 = vst.msk [vmem:[%s3] sm:$0xff] %vm67, 0.0
    $region21: #{tpu_custom_call.1} parent=1 // pred_fallthru
      _
    %v69 = vld [vmem:[#allocation2] sm:$0xff]
    %v70 = vld [vmem:[#allocation6] sm:$0xff]
    %v71 = vld [vmem:[#allocation6 + $0x8] sm:$0xff]
    %v72 = vld [vmem:[#allocation6 + $0x10] sm:$0xff]
    %v73 = vld [vmem:[#allocation6 + $0x18] sm:$0xff]
    %vm74 = vcmask 261120
    %v76 = vsel %vm74, %v69, 0
    %78 = vmatpush.msra.mxu0 0.0
    %79 = vmatpush.msra.mxu0 0.0
    %80 = vmatpush.msra.mxu0 0.0
    %81 = vmatpush.msra.mxu0 0.0
    %82 = vmatpush.msra.mxu0 0.0
    %83 = vmatpush.msra.mxu0 0.0
    %84 = vmatpush.msra.mxu0 0.0
    %85 = vmatpush.msra.mxu0 0.0
    %86 = vmatpush.msra.mxu0 0.0
    %87 = vmatpush.msra.mxu0 0.0
    %88 = vmatpush.msra.mxu0 0.0
    %89 = vmatpush.msra.mxu0 0.0
    %90 = vmatpush.msra.mxu0 %v73
    %91 = vmatpush.msra.mxu0 %v72
    %92 = vmatpush.msra.mxu0 %v71
    %93 = vmatpush.msra.mxu0 %v70
    %94 = vmatmul.f32.gmra.mxu0 %v76
    %v95 = vpop.f32.mrf.mxu0
    %v96 = vadd.f32 0.0, %v95
    %97 = vdwg.mxu0
    %98 = vst [vmem:[#allocation8] sm:$0xff] %v96
    %v99 = vmul.f32 %v96, 1.442695
    %v100 = vpow.pop %v99
    // Predicated region
    $region22: #{tpu_custom_call.1} parent=1 // pred_check
      %p101 = pneg %p44
    $region23: #{tpu_custom_call.1} parent=1 // pred_check_branch
      %103 = sbr.rel (%p101) target = $region25
    $region24: #{tpu_custom_call.1} parent=1 // pred_region
      %s104 = smul.u32 0, 128
      %v105 = vlaneseq
      %v106 = vand.u32 %v105, 127
      %v107 = vstv %s104
      %v108 = vadd.s32 %v107, %v106
      %v109 = vld [vmem:[%s3] sm:$0xff]
      %vm110 = vcmp.lt.s32.totalorder %v108, 16
      %v111 = vsel %vm110, %v100, 0.0
      %112 = vadd.xlane.f32.xlu0 %v111
      %v113 = vpop.xlane.xlu0 %112
      %v114 = vadd.f32 %v109, %v113
      %vm115 = vcmask 7168
      %116 = vst.msk [vmem:[%s3] sm:$0xff] %vm115, %v114
    $region25: #{tpu_custom_call.1} parent=1 // pred_fallthru
      _
    %p117 = scmp.ne.s32.totalorder 0, 0
    // Predicated region
    $region26: #{tpu_custom_call.1} parent=1 // pred_check
      %p118 = pneg %p117
    $region27: #{tpu_custom_call.1} parent=1 // pred_check_branch
      %120 = sbr.rel (%p118) target = $region29
    $region28: #{tpu_custom_call.1} parent=1 // pred_region
      %v121 = vld [vmem:[%s3] sm:$0xff]
      %122 = vadd.xlane.f32.xlu0 %v100
      %v123 = vpop.xlane.xlu0 %122
      %v124 = vadd.f32 %v121, %v123
      %vm125 = vcmask 7168
      %126 = vst.msk [vmem:[%s3] sm:$0xff] %vm125, %v124
    $region29: #{tpu_custom_call.1} parent=1 // pred_fallthru
      _
    // Predicated region
    $region30: #{tpu_custom_call.1} parent=1 // pred_check
      _
    $region31: #{tpu_custom_call.1} parent=1 // pred_check_branch
      %128 = sbr.rel (0) target = $region33
    $region32: #{tpu_custom_call.1} parent=1 // pred_region
      %130 = vsyncadd [#allocation5], 0
      %s132 = sshll.u32 [#allocation8], 4
      %s133 = int_to_ptr.vmem [resolvable:$true] %s132
      %s134 = sshll.u32 %s2, 4
      %s135 = int_to_ptr.hbm [resolvable:$true] %s134
      %137 = dma.vmem_to_hbm [thread:$0]  %s133, 128, %s135, [#allocation5]
    $region33: #{tpu_custom_call.1} parent=1 // pred_fallthru
      _
    // Predicated region
    $region34: #{tpu_custom_call.1} parent=1 // pred_check
      _
    $region35: #{tpu_custom_call.1} parent=1 // pred_check_branch
      %139 = sbr.rel (0) target = $region37
    $region36: #{tpu_custom_call.1} parent=1 // pred_region
      _
    $region37: #{tpu_custom_call.1} parent=1 // pred_fallthru
      _
    // Predicated region
    $region38: #{tpu_custom_call.1} parent=1 // pred_check
      _
    $region39: #{tpu_custom_call.1} parent=1 // pred_check_branch
      %141 = sbr.rel (0) target = $region41
    $region40: #{tpu_custom_call.1} parent=1 // pred_region
      %143 = dma.done [#allocation5], 128
    $region41: #{tpu_custom_call.1} parent=1 // pred_fallthru
      _
    // Predicated region
    $region42: #{tpu_custom_call.1} parent=1 // pred_check
      _
    $region43: #{tpu_custom_call.1} parent=1 // pred_check_branch
      %145 = sbr.rel (0) target = $region45
    $region44: #{tpu_custom_call.1} parent=1 // pred_region
      _
    $region45: #{tpu_custom_call.1} parent=1 // pred_fallthru
      _
    %146 = vsyncpa [#allocation4], 1
    %147 = vsyncpa [#allocation7], 1
    %148 = vsyncpa [#allocation5], 1

</llo_original>
